<compile_context>
chip_gen: v5e
topology: v5e:2x2
jax: 0.10.0
libtpu: 0.0.40
codegen_flags: <defaults>
</compile_context>

<pallas_src>
import functools
import math

import jax
import jax.numpy as jnp
from jax.experimental import pallas as pl
from jax.experimental.pallas import tpu as pltpu

EPS = 1e-5


def _batches_per_tile(B, D, N):
    """Pick nb = whole batches per row tile (tile rows = nb*D).

    Constraints:
      * nb divides B (per-batch LayerNorm over D stays tile-local),
      * tile rows are a multiple of 8 unless the tile covers the whole array
        (BlockSpec sublane rule),
      * modest per-tile VMEM working set,
      * when B >= 2, keep >= 2 grid steps so dual-TC chips stay busy.
    """
    budget_bytes = 8 * 1024 * 1024
    target_rows = 512
    best = None
    for nb in range(1, B + 1):
        if B % nb:
            continue
        rows = nb * D
        if rows % 8 != 0 and nb != B:
            continue
        if nb > 1 and rows * N * 4 * 6 > budget_bytes:
            continue
        if B >= 2 and B // nb < 2:
            continue
        if best is not None and rows > target_rows:
            break
        best = nb
    return best if best is not None else B


def mlp_block_kernel(x_ref, wt_ref, b_ref, alpha_ref, beta_ref, o_ref, *, dim, nb):
    wt = wt_ref[...]        # (N, N) bf16, already transposed to (in, out)
    bias = b_ref[...]       # (1, N) f32
    alpha = alpha_ref[...]  # (D, 1) f32
    beta = beta_ref[...]    # (D, 1) f32

    x = x_ref[...]          # (nb*D, N) f32

    # One MXU call covering all nb batches in this tile: bf16 operands, f32 accumulate.
    y = jnp.dot(x.astype(jnp.bfloat16), wt,
                preferred_element_type=jnp.float32) + bias

    # Spatial LayerNorm: per batch, reduce over the D (sublane) axis.
    # nb is a small static Python int -> static unroll, 2-D ops only.
    for i in range(nb):
        lo = i * dim
        xb = x[lo:lo + dim, :]
        yb = y[lo:lo + dim, :]
        mean = jnp.mean(yb, axis=0, keepdims=True)            # (1, N)
        mean_sq = jnp.mean(yb * yb, axis=0, keepdims=True)    # (1, N) single pass
        var = mean_sq - mean * mean
        inv = jax.lax.rsqrt(var + EPS)                        # EUP rsqrt, no divide
        yn = (yb - mean) * inv
        o_ref[lo:lo + dim, :] = xb + yn * alpha + beta        # scale/shift + residual


def mlp_block(x, w, b, alpha, beta):
    """x: (B, D, N); w: (N, N) PyTorch Linear weight; b: (N,); alpha, beta: (D,)."""
    B, D, N = x.shape
    nb = _batches_per_tile(B, D, N)
    tm = nb * D
    grid = (B * D) // tm

    # One-time parameter massaging in the wrapper (outside the kernel):
    x2 = x.reshape(B * D, N)                        # free reshape (leading-dim merge)
    wt = w.T.astype(jnp.bfloat16)                   # pre-transposed, bf16 for the MXU
    b2 = b.reshape(1, N).astype(jnp.float32)
    alpha2 = alpha.reshape(D, 1).astype(jnp.float32)
    beta2 = beta.reshape(D, 1).astype(jnp.float32)

    cost = pl.CostEstimate(
        flops=2 * B * D * N * N,
        transcendentals=B * N,                      # one rsqrt per (batch, seq) column
        bytes_accessed=2 * B * D * N * 4 + N * N * 2 + N * 4 + 2 * D * 4,
    )
    # x/out tiles are double-buffered f32, plus the bf16 copy / y intermediate and
    # the (double-buffered) bf16 weight; add slack and clamp to v7x's 64 MiB VMEM.
    vmem_limit = int(min(64 * 2 ** 20,
                         max(16 * 2 ** 20,
                             6 * tm * N * 4 + 4 * N * N * 2 + (1 << 20))))

    out2 = pl.pallas_call(
        functools.partial(mlp_block_kernel, dim=D, nb=nb),
        out_shape=jax.ShapeDtypeStruct((B * D, N), x.dtype),
        grid_spec=pltpu.PrefetchScalarGridSpec(
            num_scalar_prefetch=0,
            grid=(grid,),
            in_specs=[
                pl.BlockSpec((tm, N), lambda i: (i, 0)),   # x row tile
                pl.BlockSpec((N, N), lambda i: (0, 0)),    # W^T (bf16), constant index
                pl.BlockSpec((1, N), lambda i: (0, 0)),    # bias
                pl.BlockSpec((D, 1), lambda i: (0, 0)),    # alpha
                pl.BlockSpec((D, 1), lambda i: (0, 0)),    # beta
            ],
            out_specs=pl.BlockSpec((tm, N), lambda i: (i, 0)),
        ),
        compiler_params=pltpu.CompilerParams(
            dimension_semantics=("parallel",),
            vmem_limit_bytes=vmem_limit,
        ),
        cost_estimate=cost,
    )(x2, wt, b2, alpha2, beta2)
    # NOTE: for very small seq N the output lane axis is narrow; a (B, N, D)
    # transposed layout would give lane-dense stores but costs wrapper-side
    # transposes (extra HBM passes), so it is intentionally not done here.
    return out2.reshape(B, D, N)


def reference(x, w, b, alpha, beta):
    # Pure-JAX reference mirroring the PyTorch forward (f32, two-pass variance).
    y = jnp.einsum("bdn,mn->bdm", x, w) + b[None, None, :]
    mean = jnp.mean(y, axis=1, keepdims=True)
    var = jnp.mean((y - mean) ** 2, axis=1, keepdims=True)
    yn = (y - mean) / jnp.sqrt(var + EPS)
    yn = yn * alpha[None, :, None] + beta[None, :, None]
    return x + yn


if __name__ == "__main__":
    B, D, N = 2, 32, 8   # batch, dim (channels), seq

    key = jax.random.PRNGKey(0)
    kx, kw = jax.random.split(key)

    x = jax.random.normal(kx, (B, D, N), dtype=jnp.float32)

    # Parameter init matching reset_parameters():
    #   xavier_uniform_(fc.weight, gain=1e-8); fc.bias = 0
    gain = 1e-8
    bound = gain * math.sqrt(6.0 / (N + N))
    w = jax.random.uniform(kw, (N, N), dtype=jnp.float32, minval=-bound, maxval=bound)
    b = jnp.zeros((N,), dtype=jnp.float32)

    # LayerNormSpatial params: alpha = ones([1, dim, 1]), beta = zeros([1, dim, 1])
    alpha = jnp.ones((D,), dtype=jnp.float32)
    beta = jnp.zeros((D,), dtype=jnp.float32)

    out = mlp_block(x, w, b, alpha, beta)
    out = jax.block_until_ready(out)

    ref = reference(x, w, b, alpha, beta)
    assert out.shape == (B, D, N)
    assert jnp.allclose(out, ref, atol=1e-3, rtol=1e-3), "mismatch vs reference"

    print("KERNEL_OK")
</pallas_src>

<mosaic_0001>
module attributes {stable_mosaic.version = 11 : i64} {
  func.func @mlp_block_kernel(%arg0: i32, %arg1: memref<32x8xf32, #tpu.memory_space<vmem>>, %arg2: memref<8x8xbf16, #tpu.memory_space<vmem>>, %arg3: memref<1x8xf32, #tpu.memory_space<vmem>>, %arg4: memref<32x1xf32, #tpu.memory_space<vmem>>, %arg5: memref<32x1xf32, #tpu.memory_space<vmem>>, %arg6: memref<32x8xf32, #tpu.memory_space<vmem>>) attributes {dimension_semantics = [#tpu.dimension_semantics<parallel>], iteration_bounds = array<i64: 2>, scalar_prefetch = 0 : i64, scratch_operands = 0 : i64, tpu.core_type = #tpu.core_type<tc>, window_params = [{transform_indices = @transform_0, window_bounds = array<i64: 32, 8>}, {pipeline_mode = #tpu.pipeline_mode<synchronous>, transform_indices = @transform_1, window_bounds = array<i64: 8, 8>}, {pipeline_mode = #tpu.pipeline_mode<synchronous>, transform_indices = @transform_2, window_bounds = array<i64: 1, 8>}, {pipeline_mode = #tpu.pipeline_mode<synchronous>, transform_indices = @transform_3, window_bounds = array<i64: 32, 1>}, {pipeline_mode = #tpu.pipeline_mode<synchronous>, transform_indices = @transform_4, window_bounds = array<i64: 32, 1>}, {transform_indices = @transform_5, window_bounds = array<i64: 32, 8>}]} {
    %c0 = arith.constant 0 : index
    %c0_0 = arith.constant 0 : index
    %0 = vector.load %arg2[%c0, %c0_0] : memref<8x8xbf16, #tpu.memory_space<vmem>>, vector<8x8xbf16>
    %c0_1 = arith.constant 0 : index
    %c0_2 = arith.constant 0 : index
    %1 = vector.load %arg3[%c0_1, %c0_2] : memref<1x8xf32, #tpu.memory_space<vmem>>, vector<1x8xf32>
    %c0_3 = arith.constant 0 : index
    %c0_4 = arith.constant 0 : index
    %2 = vector.load %arg4[%c0_3, %c0_4] : memref<32x1xf32, #tpu.memory_space<vmem>>, vector<32x1xf32>
    %c0_5 = arith.constant 0 : index
    %c0_6 = arith.constant 0 : index
    %3 = vector.load %arg5[%c0_5, %c0_6] : memref<32x1xf32, #tpu.memory_space<vmem>>, vector<32x1xf32>
    %c0_7 = arith.constant 0 : index
    %c0_8 = arith.constant 0 : index
    %4 = vector.load %arg1[%c0_7, %c0_8] : memref<32x8xf32, #tpu.memory_space<vmem>>, vector<32x8xf32>
    %5 = arith.truncf %4 : vector<32x8xf32> to vector<32x8xbf16>
    %cst = arith.constant dense<0.000000e+00> : vector<32x8xf32>
    %6 = tpu.matmul %5, %0, %cst {dimension_numbers = #tpu.dot_dimension_numbers<[1], [0], [0], [1], [0, 0, 1, 1], [], []>} : vector<32x8xbf16>, vector<8x8xbf16>, vector<32x8xf32> -> vector<32x8xf32>
    %7 = vector.broadcast %1 : vector<1x8xf32> to vector<32x8xf32>
    %8 = arith.addf %6, %7 : vector<32x8xf32>
    %cst_9 = arith.constant dense<0.000000e+00> : vector<8xf32>
    %9 = vector.multi_reduction <add>, %8, %cst_9 [0] : vector<32x8xf32> to vector<8xf32>
    %10 = vector.shape_cast %9 : vector<8xf32> to vector<1x8xf32>
    %cst_10 = arith.constant 3.200000e+01 : f32
    %11 = vector.broadcast %cst_10 : f32 to vector<1x8xf32>
    %12 = arith.divf %10, %11 : vector<1x8xf32>
    %13 = arith.mulf %8, %8 : vector<32x8xf32>
    %cst_11 = arith.constant dense<0.000000e+00> : vector<8xf32>
    %14 = vector.multi_reduction <add>, %13, %cst_11 [0] : vector<32x8xf32> to vector<8xf32>
    %15 = vector.shape_cast %14 : vector<8xf32> to vector<1x8xf32>
    %cst_12 = arith.constant 3.200000e+01 : f32
    %16 = vector.broadcast %cst_12 : f32 to vector<1x8xf32>
    %17 = arith.divf %15, %16 : vector<1x8xf32>
    %18 = arith.mulf %12, %12 : vector<1x8xf32>
    %19 = arith.subf %17, %18 : vector<1x8xf32>
    %cst_13 = arith.constant 9.99999974E-6 : f32
    %20 = vector.broadcast %cst_13 : f32 to vector<1x8xf32>
    %21 = arith.addf %19, %20 : vector<1x8xf32>
    %22 = math.rsqrt %21 : vector<1x8xf32>
    %23 = vector.broadcast %12 : vector<1x8xf32> to vector<32x8xf32>
    %24 = arith.subf %8, %23 : vector<32x8xf32>
    %25 = vector.broadcast %22 : vector<1x8xf32> to vector<32x8xf32>
    %26 = arith.mulf %24, %25 : vector<32x8xf32>
    %27 = vector.broadcast %2 : vector<32x1xf32> to vector<32x8xf32>
    %28 = arith.mulf %26, %27 : vector<32x8xf32>
    %29 = arith.addf %4, %28 : vector<32x8xf32>
    %30 = vector.broadcast %3 : vector<32x1xf32> to vector<32x8xf32>
    %31 = arith.addf %29, %30 : vector<32x8xf32>
    %c0_14 = arith.constant 0 : index
    %c0_15 = arith.constant 0 : index
    %32 = vector.load %arg6[%c0_14, %c0_15] : memref<32x8xf32, #tpu.memory_space<vmem>>, vector<32x8xf32>
    tpu.vector_store %arg6[%c0_14, %c0_15], %31 {strides = array<i32>} : memref<32x8xf32, #tpu.memory_space<vmem>>, vector<32x8xf32>,
    return
  }
  func.func @transform_0(%arg0: i32) -> (i32, i32) {
    %c0_i32 = arith.constant 0 : i32
    %c0_i32_0 = arith.constant 0 : i32
    return %arg0, %c0_i32 : i32, i32
  }
  func.func @transform_1(%arg0: i32) -> (i32, i32) {
    %c0_i32 = arith.constant 0 : i32
    %c0_i32_0 = arith.constant 0 : i32
    %c0_i32_1 = arith.constant 0 : i32
    return %c0_i32, %c0_i32_0 : i32, i32
  }
  func.func @transform_2(%arg0: i32) -> (i32, i32) {
    %c0_i32 = arith.constant 0 : i32
    %c0_i32_0 = arith.constant 0 : i32
    %c0_i32_1 = arith.constant 0 : i32
    return %c0_i32, %c0_i32_0 : i32, i32
  }
  func.func @transform_3(%arg0: i32) -> (i32, i32) {
    %c0_i32 = arith.constant 0 : i32
    %c0_i32_0 = arith.constant 0 : i32
    %c0_i32_1 = arith.constant 0 : i32
    return %c0_i32, %c0_i32_0 : i32, i32
  }
  func.func @transform_4(%arg0: i32) -> (i32, i32) {
    %c0_i32 = arith.constant 0 : i32
    %c0_i32_0 = arith.constant 0 : i32
    %c0_i32_1 = arith.constant 0 : i32
    return %c0_i32, %c0_i32_0 : i32, i32
  }
  func.func @transform_5(%arg0: i32) -> (i32, i32) {
    %c0_i32 = arith.constant 0 : i32
    %c0_i32_0 = arith.constant 0 : i32
    return %arg0, %c0_i32 : i32, i32
  }
}

</mosaic_0001>

<llo_original>
// kernel: tpu_custom_call.1
$region0: #{tpu_custom_call.1}
  #allocation0 [shape = 'u32[]', space=smem, size = 0x4, offset = 0x4, fixed_abs, tag = 'smem constant byte address 0x4 - core index']
  #allocation1 [shape = 'u32[72,128]{1,0:T(1,128)}', space=vmem, size = 0x9000, scoped, tag = 'internal scratch']
  %s0 = inlined_call_operand.vmem [shape: f32[64,8], index: 0, kind: input, shape index: {}]
  %s1 = inlined_call_operand.vmem [shape: bf16[8,8], index: 1, kind: input, shape index: {}]
  %s2 = inlined_call_operand.vmem [shape: f32[1,8], index: 2, kind: input, shape index: {}]
  %s3 = inlined_call_operand.vmem [shape: f32[32,1], index: 3, kind: input, shape index: {}]
  %s4 = inlined_call_operand.vmem [shape: f32[32,1], index: 4, kind: input, shape index: {}]
  %s5 = inlined_call_operand.vmem [shape: f32[64,8], index: 5, kind: output, shape index: {}]
  %s6 = sld [smem:[#allocation0]]
  $region53: #{tpu_custom_call.1} parent=0
    _
  %s8 = ssub.s32 1, %s6
  %s9 = scalar_select 0, %s8, %s6
  loop: start=0, step=1, limit=4
  $region2: #{tpu_custom_call.1} parent=0 // loop_pre_header
    _
  $region3: #{tpu_custom_call.1} parent=0 // loop_header
    %s11 = sphi 0, %s15
    %p12 = scmp.ge.s32.totalorder %s11, 4
    %s21 = sphi 0, %s23
    %s24 = sphi 0, %s21
    %s25 = sphi 0, %s24
    %s41 = sphi 0, %s25
    %s45 = sphi 0, %s45
    %s47 = sphi 0, %s45
    %s48 = sphi 0, %s47
    %s62 = sphi 0, %s48
    %s66 = sphi 0, %s66
    %s68 = sphi 0, %s66
    %s69 = sphi 0, %s68
    %s83 = sphi 0, %s69
    %s87 = sphi 0, %s87
    %s89 = sphi 0, %s87
    %s90 = sphi 0, %s89
    %s104 = sphi 0, %s90
    %s108 = sphi 0, %s108
    %s110 = sphi 0, %s108
    %s111 = sphi 0, %s110
    %s125 = sphi 0, %s111
    %s131 = sphi 0, %s133
    %s134 = sphi 0, %s131
    %s135 = sphi 0, %s134
    %s151 = sphi 0, %s135
  $region4: #{tpu_custom_call.1} parent=0 // loop_header_branch
    %14 = sbr.rel (%p12) target = $region8
  $region5: #{tpu_custom_call.1} parent=0 // loop_body
    %s16 = ssub.s32 %s11, 1
    %s17 = ssub.s32 %s11, 2
    %s18 = sadd.s32 %s11, 1
    %s19 = ssub.s32 %s11, %s18
    %p20 = scmp.eq.s32.totalorder %s19, 0
    %s22 = sadd.s32 %s21, 1
    %s23 = scalar_select %p20, %s21, %s22
    %p26 = pneg %p20
    %p27 = scmp.eq.s32.totalorder %s11, 1
    %p28 = por %p26, %p27
    %p29 = scmp.ne.s32.totalorder %s21, %s24
    %p30 = scmp.eq.s32.totalorder %s11, 0
    %p31 = por %p29, %p30
    %p32 = scmp.ne.s32.totalorder %s21, %s24
    %p33 = scmp.eq.s32.totalorder %s16, 1
    %p34 = por %p32, %p33
    %p35 = scmp.ne.s32.totalorder %s24, %s25
    %p36 = scmp.eq.s32.totalorder %s16, 0
    %p37 = por %p35, %p36
    %p38 = scmp.ne.s32.totalorder %s24, %s25
    %p39 = scmp.eq.s32.totalorder %s17, 1
    %p40 = por %p38, %p39
    %p42 = scmp.ne.s32.totalorder %s25, %s41
    %p43 = scmp.eq.s32.totalorder %s17, 0
    %p44 = por %p42, %p43
    %s46 = sadd.s32 %s45, 1
    %p49 = scmp.eq.s32.totalorder %s11, 1
    %p50 = scmp.ne.s32.totalorder %s45, %s47
    %p51 = scmp.eq.s32.totalorder %s11, 0
    %p52 = por %p50, %p51
    %p53 = scmp.ne.s32.totalorder %s45, %s47
    %p54 = scmp.eq.s32.totalorder %s16, 1
    %p55 = por %p53, %p54
    %p56 = scmp.ne.s32.totalorder %s47, %s48
    %p57 = scmp.eq.s32.totalorder %s16, 0
    %p58 = por %p56, %p57
    %p59 = scmp.ne.s32.totalorder %s47, %s48
    %p60 = scmp.eq.s32.totalorder %s17, 1
    %p61 = por %p59, %p60
    %p63 = scmp.ne.s32.totalorder %s48, %s62
    %p64 = scmp.eq.s32.totalorder %s17, 0
    %p65 = por %p63, %p64
    %s67 = sadd.s32 %s66, 1
    %p70 = scmp.eq.s32.totalorder %s11, 1
    %p71 = scmp.ne.s32.totalorder %s66, %s68
    %p72 = scmp.eq.s32.totalorder %s11, 0
    %p73 = por %p71, %p72
    %p74 = scmp.ne.s32.totalorder %s66, %s68
    %p75 = scmp.eq.s32.totalorder %s16, 1
    %p76 = por %p74, %p75
    %p77 = scmp.ne.s32.totalorder %s68, %s69
    %p78 = scmp.eq.s32.totalorder %s16, 0
    %p79 = por %p77, %p78
    %p80 = scmp.ne.s32.totalorder %s68, %s69
    %p81 = scmp.eq.s32.totalorder %s17, 1
    %p82 = por %p80, %p81
    %p84 = scmp.ne.s32.totalorder %s69, %s83
    %p85 = scmp.eq.s32.totalorder %s17, 0
    %p86 = por %p84, %p85
    %s88 = sadd.s32 %s87, 1
    %p91 = scmp.eq.s32.totalorder %s11, 1
    %p92 = scmp.ne.s32.totalorder %s87, %s89
    %p93 = scmp.eq.s32.totalorder %s11, 0
    %p94 = por %p92, %p93
    %p95 = scmp.ne.s32.totalorder %s87, %s89
    %p96 = scmp.eq.s32.totalorder %s16, 1
    %p97 = por %p95, %p96
    %p98 = scmp.ne.s32.totalorder %s89, %s90
    %p99 = scmp.eq.s32.totalorder %s16, 0
    %p100 = por %p98, %p99
    %p101 = scmp.ne.s32.totalorder %s89, %s90
    %p102 = scmp.eq.s32.totalorder %s17, 1
    %p103 = por %p101, %p102
    %p105 = scmp.ne.s32.totalorder %s90, %s104
    %p106 = scmp.eq.s32.totalorder %s17, 0
    %p107 = por %p105, %p106
    %s109 = sadd.s32 %s108, 1
    %p112 = scmp.eq.s32.totalorder %s11, 1
    %p113 = scmp.ne.s32.totalorder %s108, %s110
    %p114 = scmp.eq.s32.totalorder %s11, 0
    %p115 = por %p113, %p114
    %p116 = scmp.ne.s32.totalorder %s108, %s110
    %p117 = scmp.eq.s32.totalorder %s16, 1
    %p118 = por %p116, %p117
    %p119 = scmp.ne.s32.totalorder %s110, %s111
    %p120 = scmp.eq.s32.totalorder %s16, 0
    %p121 = por %p119, %p120
    %p122 = scmp.ne.s32.totalorder %s110, %s111
    %p123 = scmp.eq.s32.totalorder %s17, 1
    %p124 = por %p122, %p123
    %p126 = scmp.ne.s32.totalorder %s111, %s125
    %p127 = scmp.eq.s32.totalorder %s17, 0
    %p128 = por %p126, %p127
    %s129 = ssub.s32 %s11, %s18
    %p130 = scmp.eq.s32.totalorder %s129, 0
    %s132 = sadd.s32 %s131, 1
    %s133 = scalar_select %p130, %s131, %s132
    %p136 = pneg %p130
    %p137 = scmp.eq.s32.totalorder %s11, 1
    %p138 = por %p136, %p137
    %p139 = scmp.ne.s32.totalorder %s131, %s134
    %p140 = scmp.eq.s32.totalorder %s11, 0
    %p141 = por %p139, %p140
    %p142 = scmp.ne.s32.totalorder %s131, %s134
    %p143 = scmp.eq.s32.totalorder %s16, 1
    %p144 = por %p142, %p143
    %p145 = scmp.ne.s32.totalorder %s134, %s135
    %p146 = scmp.eq.s32.totalorder %s16, 0
    %p147 = por %p145, %p146
    %p148 = scmp.ne.s32.totalorder %s134, %s135
    %p149 = scmp.eq.s32.totalorder %s17, 1
    %p150 = por %p148, %p149
    %p152 = scmp.ne.s32.totalorder %s135, %s151
    %p153 = scmp.eq.s32.totalorder %s17, 0
    %p154 = por %p152, %p153
    %p155 = scmp.le.s32.totalorder 1, %s11
    %p156 = scmp.lt.s32.totalorder %s11, 3
    %p157 = pnand %p155, %p156
    %p158 = pneg %p157
    // Predicated region
    $region9: #{tpu_custom_call.1} parent=5 // pred_check
      _
    $region10: #{tpu_custom_call.1} parent=5 // pred_check_branch
      %160 = sbr.rel (%p157) target = $region12
    $region11: #{tpu_custom_call.1} parent=5 // pred_region
      %s161 = ssub.s32 %s11, 1
      // Predicated region
      $region13: #{tpu_custom_call.1} parent=11 // pred_check
        %p162 = pneg %p58
      $region14: #{tpu_custom_call.1} parent=11 // pred_check_branch
        %164 = sbr.rel (%p162) target = $region16
      $region15: #{tpu_custom_call.1} parent=11 // pred_region
        _
      $region16: #{tpu_custom_call.1} parent=11 // pred_fallthru
        _
      // Predicated region
      $region17: #{tpu_custom_call.1} parent=11 // pred_check
        %p165 = pneg %p79
      $region18: #{tpu_custom_call.1} parent=11 // pred_check_branch
        %167 = sbr.rel (%p165) target = $region20
      $region19: #{tpu_custom_call.1} parent=11 // pred_region
        _
      $region20: #{tpu_custom_call.1} parent=11 // pred_fallthru
        _
      // Predicated region
      $region21: #{tpu_custom_call.1} parent=11 // pred_check
        %p168 = pneg %p100
      $region22: #{tpu_custom_call.1} parent=11 // pred_check_branch
        %170 = sbr.rel (%p168) target = $region24
      $region23: #{tpu_custom_call.1} parent=11 // pred_region
        _
      $region24: #{tpu_custom_call.1} parent=11 // pred_fallthru
        _
      // Predicated region
      $region25: #{tpu_custom_call.1} parent=11 // pred_check
        %p171 = pneg %p121
      $region26: #{tpu_custom_call.1} parent=11 // pred_check_branch
        %173 = sbr.rel (%p171) target = $region28
      $region27: #{tpu_custom_call.1} parent=11 // pred_region
        _
      $region28: #{tpu_custom_call.1} parent=11 // pred_fallthru
        _
    $region12: #{tpu_custom_call.1} parent=5 // pred_fallthru
      _
    %p174 = scmp.lt.s32.totalorder %s11, 2
    // Predicated region
    $region29: #{tpu_custom_call.1} parent=5 // pred_check
      %p175 = pneg %p174
    $region30: #{tpu_custom_call.1} parent=5 // pred_check_branch
      %177 = sbr.rel (%p175) target = $region32
    $region31: #{tpu_custom_call.1} parent=5 // pred_region
      // Predicated region
      $region33: #{tpu_custom_call.1} parent=31 // pred_check
        %p178 = pneg %p31
      $region34: #{tpu_custom_call.1} parent=31 // pred_check_branch
        %180 = sbr.rel (%p178) target = $region36
      $region35: #{tpu_custom_call.1} parent=31 // pred_region
        %s181 = smul.u32 4, %s11
        %p182 = scmp.lt.s32.totalorder %s181, 7
        %s183 = scalar_select %p182, %s181, 7
        %s184 = smul.addr %s183, 8
        %s185 = scalar_lea.vmem %s0, %s184
        %s186 = smul.u32 4, %s11
      $region36: #{tpu_custom_call.1} parent=31 // pred_fallthru
        _
    $region32: #{tpu_custom_call.1} parent=5 // pred_fallthru
      _
    %p187 = scmp.le.s32.totalorder 1, %s11
    %p188 = scmp.lt.s32.totalorder %s11, 3
    %p189 = pnand %p187, %p188
    %p190 = pneg %p189
    // Predicated region
    $region37: #{tpu_custom_call.1} parent=5 // pred_check
      _
    $region38: #{tpu_custom_call.1} parent=5 // pred_check_branch
      %192 = sbr.rel (%p189) target = $region40
    $region39: #{tpu_custom_call.1} parent=5 // pred_region
      %s193 = ssub.s32 %s11, 1
      %s194 = smul.u32 4, %s16
      %p195 = scmp.lt.s32.totalorder %s194, 7
      %s196 = scalar_select %p195, %s194, 7
      %s197 = smul.addr %s196, 8
      %s198 = scalar_lea.vmem %s0, %s197
      %p199 = pneg %p37
      %p200 = pneg %p34
      %p201 = pneg %p58
      %p202 = pneg %p55
      %p203 = pneg %p79
      %p204 = pneg %p76
      %p205 = pneg %p100
      %p206 = pneg %p97
      %p207 = pneg %p121
      %p208 = pneg %p118
      %p209 = pneg %p147
      %p210 = pneg %p144
      %s211 = smul.u32 4, %s16
      %p212 = scmp.lt.s32.totalorder %s211, 7
      %s213 = scalar_select %p212, %s211, 7
      %s214 = smul.addr %s213, 8
      %s215 = scalar_lea.vmem %s5, %s214
      %s216 = smul.u32 4, %s16
      %p217 = scmp.lt.s32.totalorder %s216, 7
      %s218 = scalar_select %p217, %s216, 7
      %s219 = smul.addr %s218, 8
      %s220 = scalar_lea.vmem %s0, %s219
      %s221 = smul.u32 4, %s16
      %s222 = smul.u32 4, %s16
      %p223 = scmp.lt.s32.totalorder %s222, 7
      %s224 = scalar_select %p223, %s222, 7
      %s225 = smul.addr %s224, 8
      %s226 = scalar_lea.vmem %s5, %s225
      %s227 = smul.u32 4, %s16
      %v229 = vld [vmem:[%s1] sm:$0xf]
      %v230 = vld [vmem:[%s2] sm:$0x1]
      %v231 = vld [vmem:[%s3] sm:$0xff]
      %v232 = vld [vmem:[%s3 + $0x8] sm:$0xff]
      %v233 = vld [vmem:[%s3 + $0x10] sm:$0xff]
      %v234 = vld [vmem:[%s3 + $0x18] sm:$0xff]
      %v235 = vld [vmem:[%s4] sm:$0xff]
      %v236 = vld [vmem:[%s4 + $0x8] sm:$0xff]
      %v237 = vld [vmem:[%s4 + $0x10] sm:$0xff]
      %v238 = vld [vmem:[%s4 + $0x18] sm:$0xff]
      %v239 = vld [vmem:[%s220] sm:$0xff]
      %v240 = vld [vmem:[%s220 + $0x8] sm:$0xff]
      %v241 = vld [vmem:[%s220 + $0x10] sm:$0xff]
      %v242 = vld [vmem:[%s220 + $0x18] sm:$0xff]
      %v243 = vpack.c.bf16 %v240, %v239
      %v244 = vpack.c.bf16 %v242, %v241
      %v246 = vperm.slane %v230, 0
      %vm248 = vcmask 64512
      %v250 = vsel %vm248, %v243, 0
      %v253 = vsel %vm248, %v244, 0
      %vm255 = vcmask 1043456
      %v257 = vsel %vm255, %v229, 0
      %259 = vmatpush.bf16.msra.mxu0 0
      %260 = vmatpush.bf16.msra.mxu0 0
      %261 = vmatpush.bf16.msra.mxu0 0
      %262 = vmatpush.bf16.msra.mxu0 0
      %263 = vmatpush.bf16.msra.mxu0 0
      %264 = vmatpush.bf16.msra.mxu0 0
      %265 = vmatpush.bf16.msra.mxu0 0
      %266 = vmatpush.bf16.msra.mxu0 %v257
      %267 = vmatmul.bf16.gmra.mxu0 %v250
      %v268 = vpop.f32.mrf.mxu0
      %v269 = vadd.f32 %v246, %v268
      %v270 = vpop.f32.mrf.mxu0
      %v271 = vadd.f32 %v246, %v270
      %272 = vmatmul.bf16.gmra.mxu0 %v253
      %v273 = vpop.f32.mrf.mxu0
      %v274 = vadd.f32 %v246, %v273
      %v275 = vpop.f32.mrf.mxu0
      %v276 = vadd.f32 %v246, %v275
      %277 = vdwg.mxu0
      %v278 = vsel %vm248, %v269, 0.0
      %v279 = vsel %vm248, %v271, 0.0
      %v280 = vadd.f32 %v278, %v279
      %v281 = vsel %vm248, %v274, 0.0
      %v282 = vadd.f32 %v280, %v281
      %v283 = vsel %vm248, %v276, 0.0
      %v284 = vadd.f32 %v282, %v283
      %v285 = vrot.slane %v284, 4
      %v286 = vadd.f32 %v284, %v285
      %v287 = vrot.slane %v286, 2
      %v288 = vadd.f32 %v286, %v287
      %v289 = vrot.slane %v288, 1
      %v290 = vadd.f32 %v288, %v289
      %v291 = vrcp.pop 32.0
      %v292 = vmul.f32 32.0, %v291
      %v293 = vsub.f32 1.0, %v292
      %v294 = vmul.f32 %v291, %v293
      %v295 = vadd.f32 %v291, %v294
      %vm296 = vweird.f32 %v291
      %v297 = vsel %vm296, %v291, %v295
      %v298 = vmul.f32 %v290, %v297
      %v299 = vmul.f32 %v269, %v269
      %v300 = vmul.f32 %v271, %v271
      %v301 = vmul.f32 %v274, %v274
      %v302 = vmul.f32 %v276, %v276
      %v303 = vsel %vm248, %v299, 0.0
      %v304 = vsel %vm248, %v300, 0.0
      %v305 = vadd.f32 %v303, %v304
      %v306 = vsel %vm248, %v301, 0.0
      %v307 = vadd.f32 %v305, %v306
      %v308 = vsel %vm248, %v302, 0.0
      %v309 = vadd.f32 %v307, %v308
      %v310 = vrot.slane %v309, 4
      %v311 = vadd.f32 %v309, %v310
      %v312 = vrot.slane %v311, 2
      %v313 = vadd.f32 %v311, %v312
      %v314 = vrot.slane %v313, 1
      %v315 = vadd.f32 %v313, %v314
      %v316 = vmul.f32 %v315, %v297
      %v317 = vmul.f32 %v298, %v298
      %v318 = vsub.f32 %v316, %v317
      %v319 = vadd.f32 %v318, 1e-05
      %v320 = vrsqrt.pop %v319
      %v321 = vmul.f32 %v320, %v319
      %v322 = vmul.f32 %v321, %v320
      %v323 = vmul.f32 0.5, %v322
      %v324 = vsub.f32 1.5, %v323
      %v325 = vmul.f32 %v320, %v324
      %vm326 = vweird.f32 %v319
      %vm327 = vweird.f32 %v320
      %vm328 = vmor %vm326, %vm327
      %v329 = vsel %vm328, %v320, %v325
      %v330 = vsub.f32 %v269, %v298
      %v331 = vsub.f32 %v271, %v298
      %v332 = vsub.f32 %v274, %v298
      %v333 = vsub.f32 %v276, %v298
      %v334 = vmul.f32 %v330, %v329
      %v335 = vmul.f32 %v331, %v329
      %v336 = vmul.f32 %v332, %v329
      %v337 = vmul.f32 %v333, %v329
      %339 = vset.pattern.permute.xlu0 0
      %340 = vperm.xlu0 %339, %v231
      %v341 = vpop.permute.xlu0 %340
      %344 = vset.pattern.permute.xlu0 0
      %345 = vperm.xlu0 %344, %v232
      %v346 = vpop.permute.xlu0 %345
      %349 = vset.pattern.permute.xlu0 0
      %350 = vperm.xlu0 %349, %v233
      %v351 = vpop.permute.xlu0 %350
      %354 = vset.pattern.permute.xlu0 0
      %355 = vperm.xlu0 %354, %v234
      %v356 = vpop.permute.xlu0 %355
      %v358 = vmul.f32 %v334, %v341
      %v359 = vmul.f32 %v335, %v346
      %v360 = vmul.f32 %v336, %v351
      %v361 = vmul.f32 %v337, %v356
      %v362 = vadd.f32 %v239, %v358
      %v363 = vadd.f32 %v240, %v359
      %v364 = vadd.f32 %v241, %v360
      %v365 = vadd.f32 %v242, %v361
      %367 = vset.pattern.permute.xlu0 0
      %368 = vperm.xlu0 %367, %v235
      %v369 = vpop.permute.xlu0 %368
      %372 = vset.pattern.permute.xlu0 0
      %373 = vperm.xlu0 %372, %v236
      %v374 = vpop.permute.xlu0 %373
      %377 = vset.pattern.permute.xlu0 0
      %378 = vperm.xlu0 %377, %v237
      %v379 = vpop.permute.xlu0 %378
      %382 = vset.pattern.permute.xlu0 0
      %383 = vperm.xlu0 %382, %v238
      %v384 = vpop.permute.xlu0 %383
      %v386 = vadd.f32 %v362, %v369
      %v387 = vadd.f32 %v363, %v374
      %v388 = vadd.f32 %v364, %v379
      %v389 = vadd.f32 %v365, %v384
      %390 = vst.msk [vmem:[%s226] sm:$0xff] %vm248, %v386
      %391 = vst.msk [vmem:[%s226 + $0x8] sm:$0xff] %vm248, %v387
      %392 = vst.msk [vmem:[%s226 + $0x10] sm:$0xff] %vm248, %v388
      %393 = vst.msk [vmem:[%s226 + $0x18] sm:$0xff] %vm248, %v389
      %s394 = smul.u32 4, %s16
      %p395 = scmp.lt.s32.totalorder %s394, 7
      %s396 = scalar_select %p395, %s394, 7
      %s397 = smul.addr %s396, 8
      %s398 = scalar_lea.vmem %s5, %s397
      // Predicated region
      $region41: #{tpu_custom_call.1} parent=39 // pred_check
        %p399 = pneg %p144
      $region42: #{tpu_custom_call.1} parent=39 // pred_check_branch
        %401 = sbr.rel (%p399) target = $region44
      $region43: #{tpu_custom_call.1} parent=39 // pred_region
        %s402 = smul.u32 4, %s16
      $region44: #{tpu_custom_call.1} parent=39 // pred_fallthru
        _
    $region40: #{tpu_custom_call.1} parent=5 // pred_fallthru
      _
    %p403 = scmp.le.s32.totalorder 2, %s11
    // Predicated region
    $region45: #{tpu_custom_call.1} parent=5 // pred_check
      %p404 = pneg %p403
    $region46: #{tpu_custom_call.1} parent=5 // pred_check_branch
      %406 = sbr.rel (%p404) target = $region48
    $region47: #{tpu_custom_call.1} parent=5 // pred_region
      %s407 = ssub.s32 %s11, 2
      // Predicated region
      $region49: #{tpu_custom_call.1} parent=47 // pred_check
        %p408 = pneg %p150
      $region50: #{tpu_custom_call.1} parent=47 // pred_check_branch
        %410 = sbr.rel (%p408) target = $region52
      $region51: #{tpu_custom_call.1} parent=47 // pred_region
        %s411 = smul.u32 4, %s17
        %p412 = scmp.lt.s32.totalorder %s411, 7
        %s413 = scalar_select %p412, %s411, 7
        %s414 = smul.addr %s413, 8
        %s415 = scalar_lea.vmem %s5, %s414
      $region52: #{tpu_custom_call.1} parent=47 // pred_fallthru
        _
    $region48: #{tpu_custom_call.1} parent=5 // pred_fallthru
      _
  $region6: #{tpu_custom_call.1} parent=0 // loop_footer
    %s15 = sadd.s32 1, %s11
  $region7: #{tpu_custom_call.1} parent=0 // loop_footer_branch
    %10 = sbr.rel target = $region3
  $region8: #{tpu_custom_call.1} parent=0 // loop_exit
    _

</llo_original>
